<compile_context>
chip_gen: v6e
topology: v6e:2x2x1
jax: 0.10.0
libtpu: 0.0.40
codegen_flags: <defaults>
</compile_context>

<pallas_src>
import functools

import numpy as np
import jax
import jax.numpy as jnp
from jax.experimental import pallas as pl
from jax.experimental.pallas import tpu as pltpu


def _round_up(x, m):
    return ((x + m - 1) // m) * m


# -----------------------------------------------------------------------------
# Fused kernel: one-hot gather (MXU) -> proj1 -> SiLU -> proj2 -> SiLU
# -----------------------------------------------------------------------------
def _fused_kernel(steps_ref, emb_ref, w1_ref, b1_ref, w2_ref, b2_ref, o_ref):
    TB = steps_ref.shape[0]
    T = emb_ref.shape[0]

    # Gather: build a (TB, T) one-hot from the int32 step column and contract it with
    # the VMEM-resident table on the MXU.  No per-row DMAs, no dynamic slicing.
    steps = steps_ref[...]                                        # (TB, 1) int32
    col = jax.lax.broadcasted_iota(jnp.int32, (TB, T), 1)         # (TB, T)
    onehot = (col == steps).astype(emb_ref.dtype)                 # (TB, T)
    x = jnp.dot(onehot, emb_ref[...], preferred_element_type=jnp.float32)  # (TB, E)

    # proj1 -> SiLU (f32; sigmoid runs in the otherwise-idle EUP slot)
    h = jnp.dot(x, w1_ref[...], preferred_element_type=jnp.float32) + b1_ref[...]
    h = h * jax.nn.sigmoid(h)

    # proj2 -> SiLU
    y = jnp.dot(h, w2_ref[...], preferred_element_type=jnp.float32) + b2_ref[...]
    o_ref[...] = y * jax.nn.sigmoid(y)


def diffusion_embedding_forward(diffusion_step, params, *, max_batch_tile=256):
    """diffusion_step: (B,) int -> (B, projection_dim) f32."""
    emb = params["embedding"]
    w1, b1, w2, b2 = params["w1"], params["b1"], params["w2"], params["b2"]
    T, E = emb.shape
    P = w1.shape[1]
    B = diffusion_step.shape[0]

    # Clamp untrusted indices and pad the batch to a sublane-aligned tile.
    steps = jnp.clip(diffusion_step.astype(jnp.int32), 0, T - 1)
    TB = min(_round_up(max(B, 1), 8), max_batch_tile)
    Bp = _round_up(B, TB)
    steps_p = jnp.zeros((Bp, 1), jnp.int32).at[:B, 0].set(steps)

    grid = (Bp // TB,)
    const2 = lambda shape: pl.BlockSpec(shape, lambda i: (0, 0))  # weights/table: constant block

    cost = pl.CostEstimate(
        flops=2 * Bp * (T * E + E * P + P * P),
        transcendentals=2 * Bp * P,
        bytes_accessed=4 * (Bp + T * E + E * P + P * P + 2 * P + Bp * P),
    )

    out = pl.pallas_call(
        _fused_kernel,
        out_shape=jax.ShapeDtypeStruct((Bp, P), jnp.float32),
        grid=grid,
        in_specs=[
            pl.BlockSpec((TB, 1), lambda i: (i, 0)),   # step indices (batch-tiled)
            const2((T, E)),                            # embedding table (fully VMEM-resident)
            const2((E, P)),                            # w1
            const2((1, P)),                            # b1
            const2((P, P)),                            # w2
            const2((1, P)),                            # b2
        ],
        out_specs=pl.BlockSpec((TB, P), lambda i: (i, 0)),
        compiler_params=pltpu.CompilerParams(
            # Single-step grid for small B (no megacore split of a tiny matmul); only
            # expose a parallel batch axis when it actually spans multiple tiles.
            dimension_semantics=("arbitrary",) if grid[0] == 1 else ("parallel",)),
        cost_estimate=cost,
    )(steps_p, emb, w1, b1, w2, b2)
    return out[:B]


# -----------------------------------------------------------------------------
# Module: parameter/buffer construction + pure-JAX reference
# -----------------------------------------------------------------------------
def build_embedding(num_steps, embedding_dim):
    """Matches DiffusionEmbedding._build_embedding(num_steps, embedding_dim / 2)."""
    half = embedding_dim // 2
    steps = jnp.arange(num_steps, dtype=jnp.float32)[:, None]                      # (T, 1)
    freqs = (10.0 ** (jnp.arange(half, dtype=jnp.float32) / (half - 1) * 4.0))[None, :]
    table = steps * freqs                                                          # (T, half)
    return jnp.concatenate([jnp.sin(table), jnp.cos(table)], axis=1)               # (T, E)


def init_diffusion_embedding(key, num_steps, embedding_dim, projection_dim=None):
    if projection_dim is None:
        projection_dim = embedding_dim
    k1, k2, k3, k4 = jax.random.split(key, 4)

    # torch.nn.Linear default init: U(-1/sqrt(fan_in), 1/sqrt(fan_in)) for W and b.
    # Weights are stored transposed, (fan_in, fan_out), for direct x @ W.
    def linear(kw, kb, fan_in, fan_out):
        bound = 1.0 / np.sqrt(fan_in)
        w = jax.random.uniform(kw, (fan_in, fan_out), jnp.float32, -bound, bound)
        b = jax.random.uniform(kb, (1, fan_out), jnp.float32, -bound, bound)
        return w, b

    w1, b1 = linear(k1, k2, embedding_dim, projection_dim)
    w2, b2 = linear(k3, k4, projection_dim, projection_dim)
    return dict(embedding=build_embedding(num_steps, embedding_dim),
                w1=w1, b1=b1, w2=w2, b2=b2)


def diffusion_embedding_reference(diffusion_step, params):
    """Pure-JAX reference (f32 throughout) for validation."""
    x = params["embedding"][diffusion_step]
    x = jax.nn.silu(x @ params["w1"] + params["b1"])
    return jax.nn.silu(x @ params["w2"] + params["b2"])


# -----------------------------------------------------------------------------
if __name__ == "__main__":
    num_steps = 50          # diffusion-step table rows
    embedding_dim = 128     # lane-dense (multiple of 128)
    projection_dim = 128
    batch = 16              # batch of diffusion-step indices

    key = jax.random.PRNGKey(0)
    pkey, skey = jax.random.split(key)
    params = init_diffusion_embedding(pkey, num_steps, embedding_dim, projection_dim)
    diffusion_step = jax.random.randint(skey, (batch,), 0, num_steps, dtype=jnp.int32)

    fwd = jax.jit(functools.partial(diffusion_embedding_forward, params=params))
    out = jax.block_until_ready(fwd(diffusion_step))

    ref = diffusion_embedding_reference(diffusion_step, params)

    assert out.shape == (batch, projection_dim) and out.dtype == jnp.float32
    assert bool(jnp.all(jnp.isfinite(out)))
    err = float(jnp.max(jnp.abs(out - ref)))
    # Everything is f32 (MXU f32 matmuls + f32 elementwise) -> tight tolerance.
    assert bool(jnp.allclose(out, ref, atol=1e-3, rtol=1e-3)), err
    print("KERNEL_OK")
</pallas_src>

<mosaic_0001>
module attributes {stable_mosaic.version = 11 : i64} {
  func.func @_fused_kernel(%arg0: i32, %arg1: memref<16x1xi32, #tpu.memory_space<vmem>>, %arg2: memref<50x128xf32, #tpu.memory_space<vmem>>, %arg3: memref<128x128xf32, #tpu.memory_space<vmem>>, %arg4: memref<1x128xf32, #tpu.memory_space<vmem>>, %arg5: memref<128x128xf32, #tpu.memory_space<vmem>>, %arg6: memref<1x128xf32, #tpu.memory_space<vmem>>, %arg7: memref<16x128xf32, #tpu.memory_space<vmem>>) attributes {dimension_semantics = [#tpu.dimension_semantics<arbitrary>], iteration_bounds = array<i64: 1>, scalar_prefetch = 0 : i64, scratch_operands = 0 : i64, tpu.core_type = #tpu.core_type<tc>, window_params = [{transform_indices = @transform_0, window_bounds = array<i64: 16, 1>}, {pipeline_mode = #tpu.pipeline_mode<synchronous>, transform_indices = @transform_1, window_bounds = array<i64: 50, 128>}, {pipeline_mode = #tpu.pipeline_mode<synchronous>, transform_indices = @transform_2, window_bounds = array<i64: 128, 128>}, {pipeline_mode = #tpu.pipeline_mode<synchronous>, transform_indices = @transform_3, window_bounds = array<i64: 1, 128>}, {pipeline_mode = #tpu.pipeline_mode<synchronous>, transform_indices = @transform_4, window_bounds = array<i64: 128, 128>}, {pipeline_mode = #tpu.pipeline_mode<synchronous>, transform_indices = @transform_5, window_bounds = array<i64: 1, 128>}, {transform_indices = @transform_6, window_bounds = array<i64: 16, 128>}]} {
    %c0 = arith.constant 0 : index
    %c0_0 = arith.constant 0 : index
    %0 = vector.load %arg1[%c0, %c0_0] : memref<16x1xi32, #tpu.memory_space<vmem>>, vector<16x1xi32>
    %1 = tpu.iota {dimensions = array<i32: 1>} : vector<16x50xi32>
    %2 = vector.broadcast %0 : vector<16x1xi32> to vector<16x50xi32>
    %3 = arith.cmpi eq, %1, %2 : vector<16x50xi32>
    %4 = arith.extui %3 : vector<16x50xi1> to vector<16x50xi32>
    %5 = arith.sitofp %4 : vector<16x50xi32> to vector<16x50xf32>
    %c0_1 = arith.constant 0 : index
    %c0_2 = arith.constant 0 : index
    %6 = vector.load %arg2[%c0_1, %c0_2] : memref<50x128xf32, #tpu.memory_space<vmem>>, vector<50x128xf32>
    %cst = arith.constant dense<0.000000e+00> : vector<16x128xf32>
    %7 = tpu.matmul %5, %6, %cst {dimension_numbers = #tpu.dot_dimension_numbers<[1], [0], [0], [1], [0, 0, 1, 1], [], []>} : vector<16x50xf32>, vector<50x128xf32>, vector<16x128xf32> -> vector<16x128xf32>
    %c0_3 = arith.constant 0 : index
    %c0_4 = arith.constant 0 : index
    %8 = vector.load %arg3[%c0_3, %c0_4] : memref<128x128xf32, #tpu.memory_space<vmem>>, vector<128x128xf32>
    %cst_5 = arith.constant dense<0.000000e+00> : vector<16x128xf32>
    %9 = tpu.matmul %7, %8, %cst_5 {dimension_numbers = #tpu.dot_dimension_numbers<[1], [0], [0], [1], [0, 0, 1, 1], [], []>} : vector<16x128xf32>, vector<128x128xf32>, vector<16x128xf32> -> vector<16x128xf32>
    %c0_6 = arith.constant 0 : index
    %c0_7 = arith.constant 0 : index
    %10 = vector.load %arg4[%c0_6, %c0_7] : memref<1x128xf32, #tpu.memory_space<vmem>>, vector<1x128xf32>
    %11 = vector.broadcast %10 : vector<1x128xf32> to vector<16x128xf32>
    %12 = arith.addf %9, %11 : vector<16x128xf32>
    %13 = arith.negf %12 : vector<16x128xf32>
    %14 = math.exp %13 : vector<16x128xf32>
    %cst_8 = arith.constant 1.000000e+00 : f32
    %15 = vector.broadcast %cst_8 : f32 to vector<16x128xf32>
    %16 = arith.addf %15, %14 : vector<16x128xf32>
    %17 = arith.divf %15, %16 : vector<16x128xf32>
    %18 = arith.mulf %12, %17 : vector<16x128xf32>
    %c0_9 = arith.constant 0 : index
    %c0_10 = arith.constant 0 : index
    %19 = vector.load %arg5[%c0_9, %c0_10] : memref<128x128xf32, #tpu.memory_space<vmem>>, vector<128x128xf32>
    %cst_11 = arith.constant dense<0.000000e+00> : vector<16x128xf32>
    %20 = tpu.matmul %18, %19, %cst_11 {dimension_numbers = #tpu.dot_dimension_numbers<[1], [0], [0], [1], [0, 0, 1, 1], [], []>} : vector<16x128xf32>, vector<128x128xf32>, vector<16x128xf32> -> vector<16x128xf32>
    %c0_12 = arith.constant 0 : index
    %c0_13 = arith.constant 0 : index
    %21 = vector.load %arg6[%c0_12, %c0_13] : memref<1x128xf32, #tpu.memory_space<vmem>>, vector<1x128xf32>
    %22 = vector.broadcast %21 : vector<1x128xf32> to vector<16x128xf32>
    %23 = arith.addf %20, %22 : vector<16x128xf32>
    %24 = arith.negf %23 : vector<16x128xf32>
    %25 = math.exp %24 : vector<16x128xf32>
    %cst_14 = arith.constant 1.000000e+00 : f32
    %26 = vector.broadcast %cst_14 : f32 to vector<16x128xf32>
    %27 = arith.addf %26, %25 : vector<16x128xf32>
    %28 = arith.divf %26, %27 : vector<16x128xf32>
    %29 = arith.mulf %23, %28 : vector<16x128xf32>
    %c0_15 = arith.constant 0 : index
    %c0_16 = arith.constant 0 : index
    %30 = vector.load %arg7[%c0_15, %c0_16] : memref<16x128xf32, #tpu.memory_space<vmem>>, vector<16x128xf32>
    tpu.vector_store %arg7[%c0_15, %c0_16], %29 {strides = array<i32>} : memref<16x128xf32, #tpu.memory_space<vmem>>, vector<16x128xf32>,
    return
  }
  func.func @transform_0(%arg0: i32) -> (i32, i32) {
    %c0_i32 = arith.constant 0 : i32
    %c0_i32_0 = arith.constant 0 : i32
    return %arg0, %c0_i32 : i32, i32
  }
  func.func @transform_1(%arg0: i32) -> (i32, i32) {
    %c0_i32 = arith.constant 0 : i32
    %c0_i32_0 = arith.constant 0 : i32
    %c0_i32_1 = arith.constant 0 : i32
    return %c0_i32, %c0_i32_0 : i32, i32
  }
  func.func @transform_2(%arg0: i32) -> (i32, i32) {
    %c0_i32 = arith.constant 0 : i32
    %c0_i32_0 = arith.constant 0 : i32
    %c0_i32_1 = arith.constant 0 : i32
    return %c0_i32, %c0_i32_0 : i32, i32
  }
  func.func @transform_3(%arg0: i32) -> (i32, i32) {
    %c0_i32 = arith.constant 0 : i32
    %c0_i32_0 = arith.constant 0 : i32
    %c0_i32_1 = arith.constant 0 : i32
    return %c0_i32, %c0_i32_0 : i32, i32
  }
  func.func @transform_4(%arg0: i32) -> (i32, i32) {
    %c0_i32 = arith.constant 0 : i32
    %c0_i32_0 = arith.constant 0 : i32
    %c0_i32_1 = arith.constant 0 : i32
    return %c0_i32, %c0_i32_0 : i32, i32
  }
  func.func @transform_5(%arg0: i32) -> (i32, i32) {
    %c0_i32 = arith.constant 0 : i32
    %c0_i32_0 = arith.constant 0 : i32
    %c0_i32_1 = arith.constant 0 : i32
    return %c0_i32, %c0_i32_0 : i32, i32
  }
  func.func @transform_6(%arg0: i32) -> (i32, i32) {
    %c0_i32 = arith.constant 0 : i32
    %c0_i32_0 = arith.constant 0 : i32
    return %arg0, %c0_i32 : i32, i32
  }
}

</mosaic_0001>

<llo_original>
// kernel: diffusion_embedding_forward.1
$region0: #{diffusion_embedding_forward.1}
  #allocation0 [shape = 'u32[]', space=smem, size = 0x4, offset = 0x4, fixed_abs, tag = 'smem constant byte address 0x4 - core index']
  #allocation1 [shape = 'u32[144,128]{1,0:T(1,128)}', space=vmem, size = 0x12000, scoped, tag = 'internal scratch']
  %s0 = inlined_call_operand.vmem [shape: s32[16,1], index: 0, kind: input, shape index: {}]
  %s1 = inlined_call_operand.hbm [shape: f32[50,128], index: 1, kind: input, shape index: {}]
  %s2 = inlined_call_operand.hbm [shape: f32[128,128], index: 2, kind: input, shape index: {}]
  %s3 = inlined_call_operand.vmem [shape: f32[1,128], index: 3, kind: input, shape index: {}]
  %s4 = inlined_call_operand.hbm [shape: f32[128,128], index: 4, kind: input, shape index: {}]
  %s5 = inlined_call_operand.vmem [shape: f32[1,128], index: 5, kind: input, shape index: {}]
  %s6 = inlined_call_operand.hbm [shape: f32[16,128], index: 6, kind: output, shape index: {}]
  %s7 = sld [smem:[#allocation0]]
  $region46: #{diffusion_embedding_forward.1} parent=0
    _
  %s9 = ssub.s32 1, %s7
  %s10 = scalar_select 0, %s9, %s7
  $region1: #{diffusion_embedding_forward.1} parent=0
    #allocation2 [shape = 'u8[28672]{0}', space=vmem, size = 0x7000, scoped, tag = 'input window, operand 1, single buffered']
    #allocation3 [shape = 's32[1]{0}', space=sflag, size = 0x4, scoped, tag = 'scoped memory for diffusion_embedding_forward.1']
    #allocation4 [shape = 's32[1]{0}', space=sflag, size = 0x4, scoped, tag = 'scoped memory for diffusion_embedding_forward.1']
    #allocation5 [shape = 'u8[65536]{0}', space=vmem, size = 0x10000, scoped, tag = 'input window, operand 2, single buffered']
    #allocation6 [shape = 's32[1]{0}', space=sflag, size = 0x4, scoped, tag = 'scoped memory for diffusion_embedding_forward.1']
    #allocation7 [shape = 'u8[65536]{0}', space=vmem, size = 0x10000, scoped, tag = 'input window, operand 4, single buffered']
    #allocation8 [shape = 'u8[8192]{0}', space=vmem, size = 0x2000, scoped, tag = 'output window, operand 0, single buffered']
    %11 = vsyncpa [#allocation3], 0
    %12 = vsyncpa [#allocation6], 0
    %13 = vsyncpa [#allocation4], 0
    // Predicated region
    $region2: #{diffusion_embedding_forward.1} parent=1 // pred_check
      _
    $region3: #{diffusion_embedding_forward.1} parent=1 // pred_check_branch
      %15 = sbr.rel (0) target = $region5
    $region4: #{diffusion_embedding_forward.1} parent=1 // pred_region
      _
    $region5: #{diffusion_embedding_forward.1} parent=1 // pred_fallthru
      _
    // Predicated region
    $region6: #{diffusion_embedding_forward.1} parent=1 // pred_check
      _
    $region7: #{diffusion_embedding_forward.1} parent=1 // pred_check_branch
      %17 = sbr.rel (0) target = $region9
    $region8: #{diffusion_embedding_forward.1} parent=1 // pred_region
      %s19 = ssub.s32 896, 896
      %20 = vsyncadd [#allocation3], %s19
      %s21 = sshll.u32 [#allocation2], 4
      %s22 = int_to_ptr.vmem [resolvable:$true] %s21
      %27 = dma.hbm_to_vmem [thread:$0]  %s1, 896, %s22, [#allocation3], 128, 128, 8
    $region9: #{diffusion_embedding_forward.1} parent=1 // pred_fallthru
      _
    // Predicated region
    $region10: #{diffusion_embedding_forward.1} parent=1 // pred_check
      _
    $region11: #{diffusion_embedding_forward.1} parent=1 // pred_check_branch
      %29 = sbr.rel (0) target = $region13
    $region12: #{diffusion_embedding_forward.1} parent=1 // pred_region
      %s31 = ssub.s32 2048, 2048
      %32 = vsyncadd [#allocation6], %s31
      %s33 = sshll.u32 [#allocation5], 4
      %s34 = int_to_ptr.vmem [resolvable:$true] %s33
      %39 = dma.hbm_to_vmem [thread:$0]  %s2, 2048, %s34, [#allocation6], 128, 128, 8
    $region13: #{diffusion_embedding_forward.1} parent=1 // pred_fallthru
      _
    // Predicated region
    $region14: #{diffusion_embedding_forward.1} parent=1 // pred_check
      _
    $region15: #{diffusion_embedding_forward.1} parent=1 // pred_check_branch
      %41 = sbr.rel (0) target = $region17
    $region16: #{diffusion_embedding_forward.1} parent=1 // pred_region
      _
    $region17: #{diffusion_embedding_forward.1} parent=1 // pred_fallthru
      _
    // Predicated region
    $region18: #{diffusion_embedding_forward.1} parent=1 // pred_check
      _
    $region19: #{diffusion_embedding_forward.1} parent=1 // pred_check_branch
      %43 = sbr.rel (0) target = $region21
    $region20: #{diffusion_embedding_forward.1} parent=1 // pred_region
      %s45 = ssub.s32 2048, 2048
      %46 = vsyncadd [#allocation6], %s45
      %s47 = sshll.u32 [#allocation7], 4
      %s48 = int_to_ptr.vmem [resolvable:$true] %s47
      %53 = dma.hbm_to_vmem [thread:$0]  %s4, 2048, %s48, [#allocation6], 128, 128, 8
    $region21: #{diffusion_embedding_forward.1} parent=1 // pred_fallthru
      _
    // Predicated region
    $region22: #{diffusion_embedding_forward.1} parent=1 // pred_check
      _
    $region23: #{diffusion_embedding_forward.1} parent=1 // pred_check_branch
      %55 = sbr.rel (0) target = $region25
    $region24: #{diffusion_embedding_forward.1} parent=1 // pred_region
      _
    $region25: #{diffusion_embedding_forward.1} parent=1 // pred_fallthru
      _
    // Predicated region
    $region26: #{diffusion_embedding_forward.1} parent=1 // pred_check
      _
    $region27: #{diffusion_embedding_forward.1} parent=1 // pred_check_branch
      %57 = sbr.rel (0) target = $region29
    $region28: #{diffusion_embedding_forward.1} parent=1 // pred_region
      %58 = dma.done [#allocation3], 896
    $region29: #{diffusion_embedding_forward.1} parent=1 // pred_fallthru
      _
    // Predicated region
    $region30: #{diffusion_embedding_forward.1} parent=1 // pred_check
      _
    $region31: #{diffusion_embedding_forward.1} parent=1 // pred_check_branch
      %60 = sbr.rel (0) target = $region33
    $region32: #{diffusion_embedding_forward.1} parent=1 // pred_region
      %61 = dma.done [#allocation6], 2048
    $region33: #{diffusion_embedding_forward.1} parent=1 // pred_fallthru
      _
    // Predicated region
    $region34: #{diffusion_embedding_forward.1} parent=1 // pred_check
      _
    $region35: #{diffusion_embedding_forward.1} parent=1 // pred_check_branch
      %63 = sbr.rel (0) target = $region37
    $region36: #{diffusion_embedding_forward.1} parent=1 // pred_region
      %64 = dma.done [#allocation6], 2048
    $region37: #{diffusion_embedding_forward.1} parent=1 // pred_fallthru
      _
    %v65 = vld [vmem:[%s0] sm:$0xff]
    %v66 = vld [vmem:[%s0 + $0x8] sm:$0xff]
    %v67 = vlaneseq
    %v68 = vand.u32 %v67, 127
    %69 = vset.pattern.permute.xlu0 0
    %70 = vperm.xlu0 %69, %v65
    %v71 = vpop.permute.xlu0 %70
    %72 = vset.pattern.permute.xlu0 0
    %73 = vperm.xlu0 %72, %v66
    %v74 = vpop.permute.xlu0 %73
    %vm75 = vcmp.eq.s32.totalorder %v68, %v71
    %vm76 = vcmp.eq.s32.totalorder %v68, %v74
    %v77 = vsel %vm75, 1, 0
    %v78 = vsel %vm76, 1, 0
    %v79 = vcvt.s32.f32 %v77
    %v80 = vcvt.s32.f32 %v78
    %v81 = vld [vmem:[#allocation2] sm:$0xff]
    %v82 = vld [vmem:[#allocation2 + $0x8] sm:$0xff]
    %v83 = vld [vmem:[#allocation2 + $0x10] sm:$0xff]
    %v84 = vld [vmem:[#allocation2 + $0x18] sm:$0xff]
    %v85 = vld [vmem:[#allocation2 + $0x20] sm:$0xff]
    %v86 = vld [vmem:[#allocation2 + $0x28] sm:$0xff]
    %v87 = vld [vmem:[#allocation2 + $0x30] sm:$0x3]
    %vm88 = vcmask 408576
    %v90 = vsel %vm88, %v79, 0
    %v93 = vsel %vm88, %v80, 0
    %vm95 = vcmask 1041408
    %v97 = vsel %vm95, %v87, 0
    %99 = vmatprep.subr.mxu0 0.0
    %100 = vmatpush1.msra.mxu0 0.0
    %101 = vmatprep.subr.mxu0 0.0
    %102 = vmatpush1.msra.mxu0 0.0
    %103 = vmatprep.subr.mxu0 0.0
    %104 = vmatpush1.msra.mxu0 0.0
    %105 = vmatprep.subr.mxu0 0.0
    %106 = vmatpush1.msra.mxu0 0.0
    %107 = vmatprep.subr.mxu0 0.0
    %108 = vmatpush1.msra.mxu0 0.0
    %109 = vmatprep.subr.mxu0 0.0
    %110 = vmatpush1.msra.mxu0 0.0
    %111 = vmatprep.subr.mxu0 0.0
    %112 = vmatpush1.msra.mxu0 0.0
    %113 = vmatprep.subr.mxu0 0.0
    %114 = vmatpush1.msra.mxu0 0.0
    %115 = vmatprep.subr.mxu0 0.0
    %116 = vmatpush1.msra.mxu0 0.0
    %117 = vmatprep.subr.mxu0 0.0
    %118 = vmatpush1.msra.mxu0 %v97
    %119 = vmatprep.subr.mxu0 0.0
    %120 = vmatpush1.msra.mxu0 %v86
    %121 = vmatprep.subr.mxu0 0.0
    %122 = vmatpush1.msra.mxu0 %v85
    %123 = vmatprep.subr.mxu0 0.0
    %124 = vmatpush1.msra.mxu0 %v84
    %125 = vmatprep.subr.mxu0 0.0
    %126 = vmatpush1.msra.mxu0 %v83
    %127 = vmatprep.subr.mxu0 0.0
    %128 = vmatpush1.msra.mxu0 %v82
    %129 = vmatprep.subr.mxu0 0.0
    %130 = vmatpush1.msra.mxu0 %v81
    %131 = vmatprep.subr.mxu0 0.0
    %132 = vmatpush2.msra.mxu0 0.0
    %133 = vmatprep.subr.mxu0 0.0
    %134 = vmatpush2.msra.mxu0 0.0
    %135 = vmatprep.subr.mxu0 0.0
    %136 = vmatpush2.msra.mxu0 0.0
    %137 = vmatprep.subr.mxu0 0.0
    %138 = vmatpush2.msra.mxu0 0.0
    %139 = vmatprep.subr.mxu0 0.0
    %140 = vmatpush2.msra.mxu0 0.0
    %141 = vmatprep.subr.mxu0 0.0
    %142 = vmatpush2.msra.mxu0 0.0
    %143 = vmatprep.subr.mxu0 0.0
    %144 = vmatpush2.msra.mxu0 0.0
    %145 = vmatprep.subr.mxu0 0.0
    %146 = vmatpush2.msra.mxu0 0.0
    %147 = vmatprep.subr.mxu0 0.0
    %148 = vmatpush2.msra.mxu0 0.0
    %149 = vmatprep.subr.mxu0 0.0
    %150 = vmatpush2.msra.mxu0 0.0
    %151 = vmatprep.subr.mxu0 0.0
    %152 = vmatpush2.msra.mxu0 0.0
    %153 = vmatprep.subr.mxu0 0.0
    %154 = vmatpush2.msra.mxu0 0.0
    %155 = vmatprep.subr.mxu0 0.0
    %156 = vmatpush2.msra.mxu0 0.0
    %157 = vmatprep.subr.mxu0 0.0
    %158 = vmatpush2.msra.mxu0 0.0
    %159 = vmatprep.subr.mxu0 0.0
    %160 = vmatpush2.msra.mxu0 0.0
    %161 = vmatprep.subr.mxu0 0.0
    %162 = vmatpush2.msra.mxu0 0.0
    %163 = vmatprep.mubr.f32.mxu0 0.0
    %164 = vmatmul.mubr.f32.gmra.mxu0 %v90
    %v165 = vpop.f32.mrf.mxu0
    %v166 = vadd.f32 0.0, %v165
    %v167 = vpop.f32.mrf.mxu0
    %168 = vmatprep.mubr.f32.mxu0 0.0
    %169 = vmatmul.mubr.f32.gmra.mxu0 %v93
    %v170 = vpop.f32.mrf.mxu0
    %v171 = vadd.f32 0.0, %v170
    %v172 = vpop.f32.mrf.mxu0
    %173 = vdwg.mxu0
    %v174 = vld [vmem:[#allocation5] sm:$0xff]
    %v175 = vld [vmem:[#allocation5 + $0x8] sm:$0xff]
    %v176 = vld [vmem:[#allocation5 + $0x10] sm:$0xff]
    %v177 = vld [vmem:[#allocation5 + $0x18] sm:$0xff]
    %v178 = vld [vmem:[#allocation5 + $0x20] sm:$0xff]
    %v179 = vld [vmem:[#allocation5 + $0x28] sm:$0xff]
    %v180 = vld [vmem:[#allocation5 + $0x30] sm:$0xff]
    %v181 = vld [vmem:[#allocation5 + $0x38] sm:$0xff]
    %v182 = vld [vmem:[#allocation5 + $0x40] sm:$0xff]
    %v183 = vld [vmem:[#allocation5 + $0x48] sm:$0xff]
    %v184 = vld [vmem:[#allocation5 + $0x50] sm:$0xff]
    %v185 = vld [vmem:[#allocation5 + $0x58] sm:$0xff]
    %v186 = vld [vmem:[#allocation5 + $0x60] sm:$0xff]
    %v187 = vld [vmem:[#allocation5 + $0x68] sm:$0xff]
    %v188 = vld [vmem:[#allocation5 + $0x70] sm:$0xff]
    %v189 = vld [vmem:[#allocation5 + $0x78] sm:$0xff]
    %v190 = vld [vmem:[%s3] sm:$0x1]
    %v192 = vlaneseq
    %v193 = vshrl.u32 %v192, 7
    %v194 = vsub.s32 0, %v193
    %v195 = vrot.slane %v190, %v194
    %197 = vmatprep.subr.mxu0 0.0
    %198 = vmatpush1.msra.mxu0 %v189
    %199 = vmatprep.subr.mxu0 0.0
    %200 = vmatpush1.msra.mxu0 %v188
    %201 = vmatprep.subr.mxu0 0.0
    %202 = vmatpush1.msra.mxu0 %v187
    %203 = vmatprep.subr.mxu0 0.0
    %204 = vmatpush1.msra.mxu0 %v186
    %205 = vmatprep.subr.mxu0 0.0
    %206 = vmatpush1.msra.mxu0 %v185
    %207 = vmatprep.subr.mxu0 0.0
    %208 = vmatpush1.msra.mxu0 %v184
    %209 = vmatprep.subr.mxu0 0.0
    %210 = vmatpush1.msra.mxu0 %v183
    %211 = vmatprep.subr.mxu0 0.0
    %212 = vmatpush1.msra.mxu0 %v182
    %213 = vmatprep.subr.mxu0 0.0
    %214 = vmatpush1.msra.mxu0 %v181
    %215 = vmatprep.subr.mxu0 0.0
    %216 = vmatpush1.msra.mxu0 %v180
    %217 = vmatprep.subr.mxu0 0.0
    %218 = vmatpush1.msra.mxu0 %v179
    %219 = vmatprep.subr.mxu0 0.0
    %220 = vmatpush1.msra.mxu0 %v178
    %221 = vmatprep.subr.mxu0 0.0
    %222 = vmatpush1.msra.mxu0 %v177
    %223 = vmatprep.subr.mxu0 0.0
    %224 = vmatpush1.msra.mxu0 %v176
    %225 = vmatprep.subr.mxu0 0.0
    %226 = vmatpush1.msra.mxu0 %v175
    %227 = vmatprep.subr.mxu0 0.0
    %228 = vmatpush1.msra.mxu0 %v174
    %229 = vmatprep.subr.mxu0 0.0
    %230 = vmatpush2.msra.mxu0 0.0
    %231 = vmatprep.subr.mxu0 0.0
    %232 = vmatpush2.msra.mxu0 0.0
    %233 = vmatprep.subr.mxu0 0.0
    %234 = vmatpush2.msra.mxu0 0.0
    %235 = vmatprep.subr.mxu0 0.0
    %236 = vmatpush2.msra.mxu0 0.0
    %237 = vmatprep.subr.mxu0 0.0
    %238 = vmatpush2.msra.mxu0 0.0
    %239 = vmatprep.subr.mxu0 0.0
    %240 = vmatpush2.msra.mxu0 0.0
    %241 = vmatprep.subr.mxu0 0.0
    %242 = vmatpush2.msra.mxu0 0.0
    %243 = vmatprep.subr.mxu0 0.0
    %244 = vmatpush2.msra.mxu0 0.0
    %245 = vmatprep.subr.mxu0 0.0
    %246 = vmatpush2.msra.mxu0 0.0
    %247 = vmatprep.subr.mxu0 0.0
    %248 = vmatpush2.msra.mxu0 0.0
    %249 = vmatprep.subr.mxu0 0.0
    %250 = vmatpush2.msra.mxu0 0.0
    %251 = vmatprep.subr.mxu0 0.0
    %252 = vmatpush2.msra.mxu0 0.0
    %253 = vmatprep.subr.mxu0 0.0
    %254 = vmatpush2.msra.mxu0 0.0
    %255 = vmatprep.subr.mxu0 0.0
    %256 = vmatpush2.msra.mxu0 0.0
    %257 = vmatprep.subr.mxu0 0.0
    %258 = vmatpush2.msra.mxu0 0.0
    %259 = vmatprep.subr.mxu0 0.0
    %260 = vmatpush2.msra.mxu0 0.0
    %261 = vmatprep.mubr.f32.mxu0 0.0
    %262 = vmatmul.mubr.f32.gmra.mxu0 %v166
    %v263 = vpop.f32.mrf.mxu0
    %v264 = vadd.f32 %v195, %v263
    %v265 = vpop.f32.mrf.mxu0
    %266 = vmatprep.mubr.f32.mxu0 0.0
    %267 = vmatmul.mubr.f32.gmra.mxu0 %v171
    %v268 = vpop.f32.mrf.mxu0
    %v269 = vadd.f32 %v195, %v268
    %v270 = vpop.f32.mrf.mxu0
    %271 = vdwg.mxu0
    %v272 = vxor.u32 %v264, 2147483648
    %v273 = vxor.u32 %v269, 2147483648
    %v274 = vmul.f32 %v272, 1.442695
    %v275 = vpow.pop %v274
    %v276 = vmul.f32 %v273, 1.442695
    %v277 = vpow.pop %v276
    %v278 = vadd.f32 %v275, 1.0
    %v279 = vadd.f32 %v277, 1.0
    %v280 = vrcp.pop %v278
    %v281 = vmul.f32 1.0, %v280
    %v282 = vrcp.pop %v279
    %v283 = vmul.f32 1.0, %v282
    %v284 = vmul.f32 %v264, %v281
    %v285 = vmul.f32 %v269, %v283
    %v286 = vld [vmem:[#allocation7] sm:$0xff]
    %v287 = vld [vmem:[#allocation7 + $0x8] sm:$0xff]
    %v288 = vld [vmem:[#allocation7 + $0x10] sm:$0xff]
    %v289 = vld [vmem:[#allocation7 + $0x18] sm:$0xff]
    %v290 = vld [vmem:[#allocation7 + $0x20] sm:$0xff]
    %v291 = vld [vmem:[#allocation7 + $0x28] sm:$0xff]
    %v292 = vld [vmem:[#allocation7 + $0x30] sm:$0xff]
    %v293 = vld [vmem:[#allocation7 + $0x38] sm:$0xff]
    %v294 = vld [vmem:[#allocation7 + $0x40] sm:$0xff]
    %v295 = vld [vmem:[#allocation7 + $0x48] sm:$0xff]
    %v296 = vld [vmem:[#allocation7 + $0x50] sm:$0xff]
    %v297 = vld [vmem:[#allocation7 + $0x58] sm:$0xff]
    %v298 = vld [vmem:[#allocation7 + $0x60] sm:$0xff]
    %v299 = vld [vmem:[#allocation7 + $0x68] sm:$0xff]
    %v300 = vld [vmem:[#allocation7 + $0x70] sm:$0xff]
    %v301 = vld [vmem:[#allocation7 + $0x78] sm:$0xff]
    %v302 = vld [vmem:[%s5] sm:$0x1]
    %v304 = vlaneseq
    %v305 = vshrl.u32 %v304, 7
    %v306 = vsub.s32 0, %v305
    %v307 = vrot.slane %v302, %v306
    %309 = vmatprep.subr.mxu0 0.0
    %310 = vmatpush1.msra.mxu0 %v301
    %311 = vmatprep.subr.mxu0 0.0
    %312 = vmatpush1.msra.mxu0 %v300
    %313 = vmatprep.subr.mxu0 0.0
    %314 = vmatpush1.msra.mxu0 %v299
    %315 = vmatprep.subr.mxu0 0.0
    %316 = vmatpush1.msra.mxu0 %v298
    %317 = vmatprep.subr.mxu0 0.0
    %318 = vmatpush1.msra.mxu0 %v297
    %319 = vmatprep.subr.mxu0 0.0
    %320 = vmatpush1.msra.mxu0 %v296
    %321 = vmatprep.subr.mxu0 0.0
    %322 = vmatpush1.msra.mxu0 %v295
    %323 = vmatprep.subr.mxu0 0.0
    %324 = vmatpush1.msra.mxu0 %v294
    %325 = vmatprep.subr.mxu0 0.0
    %326 = vmatpush1.msra.mxu0 %v293
    %327 = vmatprep.subr.mxu0 0.0
    %328 = vmatpush1.msra.mxu0 %v292
    %329 = vmatprep.subr.mxu0 0.0
    %330 = vmatpush1.msra.mxu0 %v291
    %331 = vmatprep.subr.mxu0 0.0
    %332 = vmatpush1.msra.mxu0 %v290
    %333 = vmatprep.subr.mxu0 0.0
    %334 = vmatpush1.msra.mxu0 %v289
    %335 = vmatprep.subr.mxu0 0.0
    %336 = vmatpush1.msra.mxu0 %v288
    %337 = vmatprep.subr.mxu0 0.0
    %338 = vmatpush1.msra.mxu0 %v287
    %339 = vmatprep.subr.mxu0 0.0
    %340 = vmatpush1.msra.mxu0 %v286
    %341 = vmatprep.subr.mxu0 0.0
    %342 = vmatpush2.msra.mxu0 0.0
    %343 = vmatprep.subr.mxu0 0.0
    %344 = vmatpush2.msra.mxu0 0.0
    %345 = vmatprep.subr.mxu0 0.0
    %346 = vmatpush2.msra.mxu0 0.0
    %347 = vmatprep.subr.mxu0 0.0
    %348 = vmatpush2.msra.mxu0 0.0
    %349 = vmatprep.subr.mxu0 0.0
    %350 = vmatpush2.msra.mxu0 0.0
    %351 = vmatprep.subr.mxu0 0.0
    %352 = vmatpush2.msra.mxu0 0.0
    %353 = vmatprep.subr.mxu0 0.0
    %354 = vmatpush2.msra.mxu0 0.0
    %355 = vmatprep.subr.mxu0 0.0
    %356 = vmatpush2.msra.mxu0 0.0
    %357 = vmatprep.subr.mxu0 0.0
    %358 = vmatpush2.msra.mxu0 0.0
    %359 = vmatprep.subr.mxu0 0.0
    %360 = vmatpush2.msra.mxu0 0.0
    %361 = vmatprep.subr.mxu0 0.0
    %362 = vmatpush2.msra.mxu0 0.0
    %363 = vmatprep.subr.mxu0 0.0
    %364 = vmatpush2.msra.mxu0 0.0
    %365 = vmatprep.subr.mxu0 0.0
    %366 = vmatpush2.msra.mxu0 0.0
    %367 = vmatprep.subr.mxu0 0.0
    %368 = vmatpush2.msra.mxu0 0.0
    %369 = vmatprep.subr.mxu0 0.0
    %370 = vmatpush2.msra.mxu0 0.0
    %371 = vmatprep.subr.mxu0 0.0
    %372 = vmatpush2.msra.mxu0 0.0
    %373 = vmatprep.mubr.f32.mxu0 0.0
    %374 = vmatmul.mubr.f32.gmra.mxu0 %v284
    %v375 = vpop.f32.mrf.mxu0
    %v376 = vadd.f32 %v307, %v375
    %v377 = vpop.f32.mrf.mxu0
    %378 = vmatprep.mubr.f32.mxu0 0.0
    %379 = vmatmul.mubr.f32.gmra.mxu0 %v285
    %v380 = vpop.f32.mrf.mxu0
    %v381 = vadd.f32 %v307, %v380
    %v382 = vpop.f32.mrf.mxu0
    %383 = vdwg.mxu0
    %v384 = vxor.u32 %v376, 2147483648
    %v385 = vxor.u32 %v381, 2147483648
    %v386 = vmul.f32 %v384, 1.442695
    %v387 = vpow.pop %v386
    %v388 = vmul.f32 %v385, 1.442695
    %v389 = vpow.pop %v388
    %v390 = vadd.f32 %v387, 1.0
    %v391 = vadd.f32 %v389, 1.0
    %v392 = vrcp.pop %v390
    %v393 = vmul.f32 1.0, %v392
    %v394 = vrcp.pop %v391
    %v395 = vmul.f32 1.0, %v394
    %v396 = vmul.f32 %v376, %v393
    %v397 = vmul.f32 %v381, %v395
    %398 = vst [vmem:[#allocation8] sm:$0xff] %v396
    %399 = vst [vmem:[#allocation8 + $0x8] sm:$0xff] %v397
    // Predicated region
    $region38: #{diffusion_embedding_forward.1} parent=1 // pred_check
      _
    $region39: #{diffusion_embedding_forward.1} parent=1 // pred_check_branch
      %401 = sbr.rel (0) target = $region41
    $region40: #{diffusion_embedding_forward.1} parent=1 // pred_region
      %s403 = ssub.s32 256, 256
      %404 = vsyncadd [#allocation4], %s403
      %s405 = sshll.u32 [#allocation8], 4
      %s406 = int_to_ptr.vmem [resolvable:$true] %s405
      %411 = dma.vmem_to_hbm [thread:$0]  %s406, 256, %s6, [#allocation4], 128, 128, 8
    $region41: #{diffusion_embedding_forward.1} parent=1 // pred_fallthru
      _
    // Predicated region
    $region42: #{diffusion_embedding_forward.1} parent=1 // pred_check
      _
    $region43: #{diffusion_embedding_forward.1} parent=1 // pred_check_branch
      %413 = sbr.rel (0) target = $region45
    $region44: #{diffusion_embedding_forward.1} parent=1 // pred_region
      %414 = dma.done [#allocation4], 256
    $region45: #{diffusion_embedding_forward.1} parent=1 // pred_fallthru
      _
    %415 = vsyncpa [#allocation3], 1
    %416 = vsyncpa [#allocation6], 1
    %417 = vsyncpa [#allocation4], 1

</llo_original>
